<compile_context>
chip_gen: v6e
topology: v6e:2x2x1
jax: 0.10.0
libtpu: 0.0.40
codegen_flags: <defaults>
</compile_context>

<pallas_src>
import functools

import jax
import jax.numpy as jnp
from jax import lax
from jax.experimental import pallas as pl
from jax.experimental.pallas import tpu as pltpu

_LANE = 128


def _round_up(a, b):
    return ((a + b - 1) // b) * b


def _symnet_kernel(ws_ref, bs_ref, wf_ref, bf_ref, x_ref, o_ref,
                   *, n_hidden, n_deriv, rc, unroll):
    """One block of TR*128 positions.

    ws_ref : SMEM (n_hidden*2*cmax,)  hidden weights, flat (padded cols never read)
    bs_ref : SMEM (n_hidden*2,)       hidden biases
    wf_ref : SMEM (cmax,)             final-layer weight
    bf_ref : SMEM (1,)                final-layer bias
    x_ref  : VMEM (n_deriv, TR, 128)  input features (f32 or bf16)
    o_ref  : VMEM (TR, 128)           output (f32)
    """
    cmax = n_deriv + n_hidden
    tr = o_ref.shape[0]
    num_chunks = tr // rc

    # Hoist every weight/bias scalar out of the chunk loop (loop-invariant
    # SMEM scalar loads, done once per grid step).
    W = [[[ws_ref[(2 * k + j) * cmax + c] for c in range(n_deriv + k)]
          for j in range(2)] for k in range(n_hidden)]
    B = [[bs_ref[2 * k + j] for j in range(2)] for k in range(n_hidden)]
    WF = [wf_ref[c] for c in range(cmax)]
    BF = bf_ref[0]

    def chunk_body(j, carry):
        row = pl.multiple_of(j * rc, rc)
        feat = []
        for c in range(n_deriv):
            f = x_ref[c, pl.ds(row, rc), :]
            if f.dtype != jnp.float32:
                f = f.astype(jnp.float32)
            feat.append(f)
        for k in range(n_hidden):
            c_in = n_deriv + k
            o0 = W[k][0][0] * feat[0]
            o1 = W[k][1][0] * feat[0]
            for c in range(1, c_in):
                o0 = o0 + W[k][0][c] * feat[c]
                o1 = o1 + W[k][1][c] * feat[c]
            o0 = o0 + B[k][0]
            o1 = o1 + B[k][1]
            feat.append(o0 * o1)                      # appended "hidden" feature
        out = WF[0] * feat[0]
        for c in range(1, cmax):
            out = out + WF[c] * feat[c]
        out = out + BF
        o_ref[pl.ds(row, rc), :] = out
        return carry

    # Partially-unrolled loop: bounded live vregs + LLO scheduling visibility,
    # no 100s-of-bodies static unroll at TR=1024.
    lax.fori_loop(0, num_chunks, chunk_body, 0, unroll=unroll)


@functools.partial(
    jax.jit,
    static_argnames=("n_hidden", "n_deriv", "block_rows", "chunk_rows",
                     "stream_dtype"))
def symnet_forward(x, Ws, bs, Wf, bf, *, n_hidden, n_deriv,
                   block_rows=1024, chunk_rows=None,
                   stream_dtype=jnp.float32):
    """x: (batch, X_dim, n_deriv) float32 -> (batch, X_dim) float32."""
    batch, x_dim, c = x.shape
    assert c == n_deriv
    cmax = n_deriv + n_hidden
    n = batch * x_dim

    in_bytes = jnp.dtype(stream_dtype).itemsize
    sub = 16 if in_bytes == 2 else 8              # bf16 packs 2 rows/sublane

    # Positions as (rows, 128 lanes); pad only to sublane granularity.
    n_rows = -(-n // _LANE)
    n_rows_pad = _round_up(n_rows, sub)

    # Chunk rows: one independent FMA chain per vreg-row; keep live vregs
    # (rc/8)*(cmax+3) comfortably inside the 64-entry vreg file.
    if chunk_rows is None:
        rc = max(8, min(32, 8 * max(1, 48 // (cmax + 3))))
    else:
        rc = chunk_rows
    rc = _round_up(rc, sub)
    rc = min(rc, n_rows_pad)

    # Block rows: biggest tile fitting a ~24 MiB double-buffered in+out budget
    # (portable to v7x's 64 MiB per-TC VMEM), then clamp so the grid has >= 2
    # steps whenever there is enough work (feeds both v7x TensorCores).
    bytes_per_row_2buf = 2 * _LANE * (n_deriv * in_bytes + 4)
    vmem_rows = max(rc, ((24 << 20) // bytes_per_row_2buf) // rc * rc)
    tr = min(_round_up(block_rows, rc), vmem_rows)
    if n_rows_pad > rc:
        tr = min(tr, _round_up(-(-n_rows_pad // 2), rc))
    tr = max(rc, min(tr, _round_up(n_rows_pad, rc)))

    grid = -(-n_rows_pad // tr)                   # last block may be partial
    num_chunks = tr // rc
    unroll = max(1, min(4, num_chunks))

    n_pad = n_rows_pad * _LANE
    # (n_deriv, N) features-on-sublanes layout.
    # TODO(synk): produce this layout upstream to remove the extra XLA pass.
    xt = jnp.transpose(x.reshape(n, n_deriv).astype(jnp.float32), (1, 0))
    xt = jnp.pad(xt, ((0, 0), (0, n_pad - n)))
    xt = xt.reshape(n_deriv, n_rows_pad, _LANE).astype(stream_dtype)

    # Flat 1-D SMEM params (1-D pads only to next pow2, no [8,128] word pad).
    ws1 = Ws.astype(jnp.float32).reshape(n_hidden * 2 * cmax)
    bs1 = bs.astype(jnp.float32).reshape(n_hidden * 2)
    wf1 = Wf.astype(jnp.float32).reshape(cmax)
    bf1 = bf.astype(jnp.float32).reshape(1)

    kernel = functools.partial(_symnet_kernel, n_hidden=n_hidden,
                               n_deriv=n_deriv, rc=rc, unroll=unroll)
    smem_spec = pl.BlockSpec(memory_space=pltpu.MemorySpace.SMEM)

    tile_bytes = 2 * tr * _LANE * (n_deriv * in_bytes + 4)
    vmem_limit = int(min(56 << 20, max(32 << 20, tile_bytes + (8 << 20))))

    out = pl.pallas_call(
        kernel,
        out_shape=jax.ShapeDtypeStruct((n_rows_pad, _LANE), jnp.float32),
        grid_spec=pltpu.PrefetchScalarGridSpec(
            num_scalar_prefetch=0,
            grid=(grid,),
            in_specs=[
                smem_spec,                                    # ws (flat)
                smem_spec,                                    # bs
                smem_spec,                                    # wf
                smem_spec,                                    # bf
                pl.BlockSpec((n_deriv, tr, _LANE), lambda i: (0, i, 0)),
            ],
            out_specs=pl.BlockSpec((tr, _LANE), lambda i: (i, 0)),
        ),
        compiler_params=pltpu.CompilerParams(
            dimension_semantics=("parallel",),
            vmem_limit_bytes=vmem_limit),
    )(ws1, bs1, wf1, bf1, xt)

    return out.reshape(n_pad)[:n].reshape(batch, x_dim)


def init_symnet_params(key, n_hidden, n_deriv):
    """PyTorch-default-style init (uniform(-1/sqrt(fan_in), +1/sqrt(fan_in))).

    Returns zero-padded stacked params:
      Ws: (n_hidden, 2, Cmax), bs: (n_hidden, 2), Wf: (1, Cmax), bf: (1, 1)
    """
    cmax = n_deriv + n_hidden
    Ws = jnp.zeros((n_hidden, 2, cmax), jnp.float32)
    bs = jnp.zeros((n_hidden, 2), jnp.float32)
    keys = jax.random.split(key, 2 * n_hidden + 2)
    for k in range(n_hidden):
        fan_in = n_deriv + k
        bound = 1.0 / jnp.sqrt(fan_in)
        wk = jax.random.uniform(keys[2 * k], (2, fan_in), jnp.float32,
                                minval=-bound, maxval=bound)
        bk = jax.random.uniform(keys[2 * k + 1], (2,), jnp.float32,
                                minval=-bound, maxval=bound)
        Ws = Ws.at[k, :, :fan_in].set(wk)
        bs = bs.at[k].set(bk)
    fan_in = cmax
    bound = 1.0 / jnp.sqrt(fan_in)
    Wf = jax.random.uniform(keys[-2], (1, cmax), jnp.float32,
                            minval=-bound, maxval=bound)
    bf = jax.random.uniform(keys[-1], (1, 1), jnp.float32,
                            minval=-bound, maxval=bound)
    return Ws, bs, Wf, bf


def symnet_reference(x, Ws, bs, Wf, bf, *, n_hidden, n_deriv):
    """Pure-JAX reference mirroring the PyTorch forward exactly."""
    feat = x.astype(jnp.float32)                    # (B, X, n_deriv)
    for k in range(n_hidden):
        w = Ws[k, :, :n_deriv + k]                  # (2, n_deriv+k)
        o = feat @ w.T + bs[k]                      # (B, X, 2)
        feat = jnp.concatenate([feat, o[..., :1] * o[..., 1:]], axis=-1)
    out = feat @ Wf[0] + bf[0, 0]                   # (B, X)
    return out


if __name__ == "__main__":
    key = jax.random.PRNGKey(0)
    k_x, k_p, k_x2, k_p2 = jax.random.split(key, 4)

    # --- Test 1: module's nominal small shapes, default tiling ---
    n_hidden, n_deriv = 3, 4
    batch, x_dim = 2, 16
    x = jax.random.normal(k_x, (batch, x_dim, n_deriv), jnp.float32)
    Ws, bs, Wf, bf = init_symnet_params(k_p, n_hidden, n_deriv)

    y = jax.block_until_ready(
        symnet_forward(x, Ws, bs, Wf, bf, n_hidden=n_hidden, n_deriv=n_deriv))
    y_ref = symnet_reference(x, Ws, bs, Wf, bf,
                             n_hidden=n_hidden, n_deriv=n_deriv)
    assert y.shape == (batch, x_dim)
    assert jnp.allclose(y, y_ref, atol=1e-5, rtol=1e-5), (y, y_ref)

    # --- Test 2: multi-block grid + partial last block + fori_loop chunks ---
    n_hidden2, n_deriv2 = 4, 5
    batch2, x_dim2 = 3, 700
    x2 = jax.random.normal(k_x2, (batch2, x_dim2, n_deriv2), jnp.float32)
    Ws2, bs2, Wf2, bf2 = init_symnet_params(k_p2, n_hidden2, n_deriv2)

    y2 = jax.block_until_ready(
        symnet_forward(x2, Ws2, bs2, Wf2, bf2, n_hidden=n_hidden2,
                       n_deriv=n_deriv2, block_rows=16, chunk_rows=8))
    y2_ref = symnet_reference(x2, Ws2, bs2, Wf2, bf2,
                              n_hidden=n_hidden2, n_deriv=n_deriv2)
    assert jnp.allclose(y2, y2_ref, atol=2e-5, rtol=2e-5)

    # --- Test 3: bf16-streamed input (v5e HBM-halving option) ---
    y3 = jax.block_until_ready(
        symnet_forward(x2, Ws2, bs2, Wf2, bf2, n_hidden=n_hidden2,
                       n_deriv=n_deriv2, stream_dtype=jnp.bfloat16))
    x2_q = x2.astype(jnp.bfloat16).astype(jnp.float32)
    y3_ref = symnet_reference(x2_q, Ws2, bs2, Wf2, bf2,
                              n_hidden=n_hidden2, n_deriv=n_deriv2)
    assert jnp.allclose(y3, y3_ref, atol=1e-5, rtol=1e-5)

    print("KERNEL_OK")
</pallas_src>

<mosaic_0001>
module attributes {stable_mosaic.version = 11 : i64} {
  func.func @_symnet_kernel(%arg0: i32, %arg1: memref<42xf32, #tpu.memory_space<smem>>, %arg2: memref<6xf32, #tpu.memory_space<smem>>, %arg3: memref<7xf32, #tpu.memory_space<smem>>, %arg4: memref<1xf32, #tpu.memory_space<smem>>, %arg5: memref<4x8x128xf32, #tpu.memory_space<vmem>>, %arg6: memref<8x128xf32, #tpu.memory_space<vmem>>) attributes {dimension_semantics = [#tpu.dimension_semantics<parallel>], iteration_bounds = array<i64: 1>, scalar_prefetch = 0 : i64, scratch_operands = 0 : i64, tpu.core_type = #tpu.core_type<tc>, window_params = [{transform_indices = @transform_0, window_bounds = array<i64: 42>}, {transform_indices = @transform_1, window_bounds = array<i64: 6>}, {transform_indices = @transform_2, window_bounds = array<i64: 7>}, {transform_indices = @transform_3, window_bounds = array<i64: 1>}, {transform_indices = @transform_4, window_bounds = array<i64: 4, 8, 128>}, {transform_indices = @transform_5, window_bounds = array<i64: 8, 128>}]} {
    %c0 = arith.constant 0 : index
    %0 = memref.load %arg1[%c0] : memref<42xf32, #tpu.memory_space<smem>>
    %c1 = arith.constant 1 : index
    %1 = memref.load %arg1[%c1] : memref<42xf32, #tpu.memory_space<smem>>
    %c2 = arith.constant 2 : index
    %2 = memref.load %arg1[%c2] : memref<42xf32, #tpu.memory_space<smem>>
    %c3 = arith.constant 3 : index
    %3 = memref.load %arg1[%c3] : memref<42xf32, #tpu.memory_space<smem>>
    %c7 = arith.constant 7 : index
    %4 = memref.load %arg1[%c7] : memref<42xf32, #tpu.memory_space<smem>>
    %c8 = arith.constant 8 : index
    %5 = memref.load %arg1[%c8] : memref<42xf32, #tpu.memory_space<smem>>
    %c9 = arith.constant 9 : index
    %6 = memref.load %arg1[%c9] : memref<42xf32, #tpu.memory_space<smem>>
    %c10 = arith.constant 10 : index
    %7 = memref.load %arg1[%c10] : memref<42xf32, #tpu.memory_space<smem>>
    %c14 = arith.constant 14 : index
    %8 = memref.load %arg1[%c14] : memref<42xf32, #tpu.memory_space<smem>>
    %c15 = arith.constant 15 : index
    %9 = memref.load %arg1[%c15] : memref<42xf32, #tpu.memory_space<smem>>
    %c16 = arith.constant 16 : index
    %10 = memref.load %arg1[%c16] : memref<42xf32, #tpu.memory_space<smem>>
    %c17 = arith.constant 17 : index
    %11 = memref.load %arg1[%c17] : memref<42xf32, #tpu.memory_space<smem>>
    %c18 = arith.constant 18 : index
    %12 = memref.load %arg1[%c18] : memref<42xf32, #tpu.memory_space<smem>>
    %c21 = arith.constant 21 : index
    %13 = memref.load %arg1[%c21] : memref<42xf32, #tpu.memory_space<smem>>
    %c22 = arith.constant 22 : index
    %14 = memref.load %arg1[%c22] : memref<42xf32, #tpu.memory_space<smem>>
    %c23 = arith.constant 23 : index
    %15 = memref.load %arg1[%c23] : memref<42xf32, #tpu.memory_space<smem>>
    %c24 = arith.constant 24 : index
    %16 = memref.load %arg1[%c24] : memref<42xf32, #tpu.memory_space<smem>>
    %c25 = arith.constant 25 : index
    %17 = memref.load %arg1[%c25] : memref<42xf32, #tpu.memory_space<smem>>
    %c28 = arith.constant 28 : index
    %18 = memref.load %arg1[%c28] : memref<42xf32, #tpu.memory_space<smem>>
    %c29 = arith.constant 29 : index
    %19 = memref.load %arg1[%c29] : memref<42xf32, #tpu.memory_space<smem>>
    %c30 = arith.constant 30 : index
    %20 = memref.load %arg1[%c30] : memref<42xf32, #tpu.memory_space<smem>>
    %c31 = arith.constant 31 : index
    %21 = memref.load %arg1[%c31] : memref<42xf32, #tpu.memory_space<smem>>
    %c32 = arith.constant 32 : index
    %22 = memref.load %arg1[%c32] : memref<42xf32, #tpu.memory_space<smem>>
    %c33 = arith.constant 33 : index
    %23 = memref.load %arg1[%c33] : memref<42xf32, #tpu.memory_space<smem>>
    %c35 = arith.constant 35 : index
    %24 = memref.load %arg1[%c35] : memref<42xf32, #tpu.memory_space<smem>>
    %c36 = arith.constant 36 : index
    %25 = memref.load %arg1[%c36] : memref<42xf32, #tpu.memory_space<smem>>
    %c37 = arith.constant 37 : index
    %26 = memref.load %arg1[%c37] : memref<42xf32, #tpu.memory_space<smem>>
    %c38 = arith.constant 38 : index
    %27 = memref.load %arg1[%c38] : memref<42xf32, #tpu.memory_space<smem>>
    %c39 = arith.constant 39 : index
    %28 = memref.load %arg1[%c39] : memref<42xf32, #tpu.memory_space<smem>>
    %c40 = arith.constant 40 : index
    %29 = memref.load %arg1[%c40] : memref<42xf32, #tpu.memory_space<smem>>
    %c0_0 = arith.constant 0 : index
    %30 = memref.load %arg2[%c0_0] : memref<6xf32, #tpu.memory_space<smem>>
    %c1_1 = arith.constant 1 : index
    %31 = memref.load %arg2[%c1_1] : memref<6xf32, #tpu.memory_space<smem>>
    %c2_2 = arith.constant 2 : index
    %32 = memref.load %arg2[%c2_2] : memref<6xf32, #tpu.memory_space<smem>>
    %c3_3 = arith.constant 3 : index
    %33 = memref.load %arg2[%c3_3] : memref<6xf32, #tpu.memory_space<smem>>
    %c4 = arith.constant 4 : index
    %34 = memref.load %arg2[%c4] : memref<6xf32, #tpu.memory_space<smem>>
    %c5 = arith.constant 5 : index
    %35 = memref.load %arg2[%c5] : memref<6xf32, #tpu.memory_space<smem>>
    %c0_4 = arith.constant 0 : index
    %36 = memref.load %arg3[%c0_4] : memref<7xf32, #tpu.memory_space<smem>>
    %c1_5 = arith.constant 1 : index
    %37 = memref.load %arg3[%c1_5] : memref<7xf32, #tpu.memory_space<smem>>
    %c2_6 = arith.constant 2 : index
    %38 = memref.load %arg3[%c2_6] : memref<7xf32, #tpu.memory_space<smem>>
    %c3_7 = arith.constant 3 : index
    %39 = memref.load %arg3[%c3_7] : memref<7xf32, #tpu.memory_space<smem>>
    %c4_8 = arith.constant 4 : index
    %40 = memref.load %arg3[%c4_8] : memref<7xf32, #tpu.memory_space<smem>>
    %c5_9 = arith.constant 5 : index
    %41 = memref.load %arg3[%c5_9] : memref<7xf32, #tpu.memory_space<smem>>
    %c6 = arith.constant 6 : index
    %42 = memref.load %arg3[%c6] : memref<7xf32, #tpu.memory_space<smem>>
    %c0_10 = arith.constant 0 : index
    %43 = memref.load %arg4[%c0_10] : memref<1xf32, #tpu.memory_space<smem>>
    %c0_i32 = arith.constant 0 : i32
    %c8_i32 = arith.constant 8 : i32
    %44 = arith.muli %c0_i32, %c8_i32 : i32
    %45 = tpu.assume_multiple %44, 8 : i32
    %c0_11 = arith.constant 0 : index
    %46 = arith.index_cast %45 : i32 to index
    %c0_12 = arith.constant 0 : index
    %47 = vector.load %arg5[%c0_11, %46, %c0_12] : memref<4x8x128xf32, #tpu.memory_space<vmem>>, vector<1x8x128xf32>
    %48 = vector.shape_cast %47 : vector<1x8x128xf32> to vector<8x128xf32>
    %c1_13 = arith.constant 1 : index
    %49 = arith.index_cast %45 : i32 to index
    %c0_14 = arith.constant 0 : index
    %50 = vector.load %arg5[%c1_13, %49, %c0_14] : memref<4x8x128xf32, #tpu.memory_space<vmem>>, vector<1x8x128xf32>
    %51 = vector.shape_cast %50 : vector<1x8x128xf32> to vector<8x128xf32>
    %c2_15 = arith.constant 2 : index
    %52 = arith.index_cast %45 : i32 to index
    %c0_16 = arith.constant 0 : index
    %53 = vector.load %arg5[%c2_15, %52, %c0_16] : memref<4x8x128xf32, #tpu.memory_space<vmem>>, vector<1x8x128xf32>
    %54 = vector.shape_cast %53 : vector<1x8x128xf32> to vector<8x128xf32>
    %c3_17 = arith.constant 3 : index
    %55 = arith.index_cast %45 : i32 to index
    %c0_18 = arith.constant 0 : index
    %56 = vector.load %arg5[%c3_17, %55, %c0_18] : memref<4x8x128xf32, #tpu.memory_space<vmem>>, vector<1x8x128xf32>
    %57 = vector.shape_cast %56 : vector<1x8x128xf32> to vector<8x128xf32>
    %58 = vector.broadcast %0 : f32 to vector<8x128xf32>
    %59 = arith.mulf %58, %48 : vector<8x128xf32>
    %60 = vector.broadcast %4 : f32 to vector<8x128xf32>
    %61 = arith.mulf %60, %48 : vector<8x128xf32>
    %62 = vector.broadcast %1 : f32 to vector<8x128xf32>
    %63 = arith.mulf %62, %51 : vector<8x128xf32>
    %64 = arith.addf %59, %63 : vector<8x128xf32>
    %65 = vector.broadcast %5 : f32 to vector<8x128xf32>
    %66 = arith.mulf %65, %51 : vector<8x128xf32>
    %67 = arith.addf %61, %66 : vector<8x128xf32>
    %68 = vector.broadcast %2 : f32 to vector<8x128xf32>
    %69 = arith.mulf %68, %54 : vector<8x128xf32>
    %70 = arith.addf %64, %69 : vector<8x128xf32>
    %71 = vector.broadcast %6 : f32 to vector<8x128xf32>
    %72 = arith.mulf %71, %54 : vector<8x128xf32>
    %73 = arith.addf %67, %72 : vector<8x128xf32>
    %74 = vector.broadcast %3 : f32 to vector<8x128xf32>
    %75 = arith.mulf %74, %57 : vector<8x128xf32>
    %76 = arith.addf %70, %75 : vector<8x128xf32>
    %77 = vector.broadcast %7 : f32 to vector<8x128xf32>
    %78 = arith.mulf %77, %57 : vector<8x128xf32>
    %79 = arith.addf %73, %78 : vector<8x128xf32>
    %80 = vector.broadcast %30 : f32 to vector<8x128xf32>
    %81 = arith.addf %76, %80 : vector<8x128xf32>
    %82 = vector.broadcast %31 : f32 to vector<8x128xf32>
    %83 = arith.addf %79, %82 : vector<8x128xf32>
    %84 = arith.mulf %81, %83 : vector<8x128xf32>
    %85 = vector.broadcast %8 : f32 to vector<8x128xf32>
    %86 = arith.mulf %85, %48 : vector<8x128xf32>
    %87 = vector.broadcast %13 : f32 to vector<8x128xf32>
    %88 = arith.mulf %87, %48 : vector<8x128xf32>
    %89 = vector.broadcast %9 : f32 to vector<8x128xf32>
    %90 = arith.mulf %89, %51 : vector<8x128xf32>
    %91 = arith.addf %86, %90 : vector<8x128xf32>
    %92 = vector.broadcast %14 : f32 to vector<8x128xf32>
    %93 = arith.mulf %92, %51 : vector<8x128xf32>
    %94 = arith.addf %88, %93 : vector<8x128xf32>
    %95 = vector.broadcast %10 : f32 to vector<8x128xf32>
    %96 = arith.mulf %95, %54 : vector<8x128xf32>
    %97 = arith.addf %91, %96 : vector<8x128xf32>
    %98 = vector.broadcast %15 : f32 to vector<8x128xf32>
    %99 = arith.mulf %98, %54 : vector<8x128xf32>
    %100 = arith.addf %94, %99 : vector<8x128xf32>
    %101 = vector.broadcast %11 : f32 to vector<8x128xf32>
    %102 = arith.mulf %101, %57 : vector<8x128xf32>
    %103 = arith.addf %97, %102 : vector<8x128xf32>
    %104 = vector.broadcast %16 : f32 to vector<8x128xf32>
    %105 = arith.mulf %104, %57 : vector<8x128xf32>
    %106 = arith.addf %100, %105 : vector<8x128xf32>
    %107 = vector.broadcast %12 : f32 to vector<8x128xf32>
    %108 = arith.mulf %107, %84 : vector<8x128xf32>
    %109 = arith.addf %103, %108 : vector<8x128xf32>
    %110 = vector.broadcast %17 : f32 to vector<8x128xf32>
    %111 = arith.mulf %110, %84 : vector<8x128xf32>
    %112 = arith.addf %106, %111 : vector<8x128xf32>
    %113 = vector.broadcast %32 : f32 to vector<8x128xf32>
    %114 = arith.addf %109, %113 : vector<8x128xf32>
    %115 = vector.broadcast %33 : f32 to vector<8x128xf32>
    %116 = arith.addf %112, %115 : vector<8x128xf32>
    %117 = arith.mulf %114, %116 : vector<8x128xf32>
    %118 = vector.broadcast %18 : f32 to vector<8x128xf32>
    %119 = arith.mulf %118, %48 : vector<8x128xf32>
    %120 = vector.broadcast %24 : f32 to vector<8x128xf32>
    %121 = arith.mulf %120, %48 : vector<8x128xf32>
    %122 = vector.broadcast %19 : f32 to vector<8x128xf32>
    %123 = arith.mulf %122, %51 : vector<8x128xf32>
    %124 = arith.addf %119, %123 : vector<8x128xf32>
    %125 = vector.broadcast %25 : f32 to vector<8x128xf32>
    %126 = arith.mulf %125, %51 : vector<8x128xf32>
    %127 = arith.addf %121, %126 : vector<8x128xf32>
    %128 = vector.broadcast %20 : f32 to vector<8x128xf32>
    %129 = arith.mulf %128, %54 : vector<8x128xf32>
    %130 = arith.addf %124, %129 : vector<8x128xf32>
    %131 = vector.broadcast %26 : f32 to vector<8x128xf32>
    %132 = arith.mulf %131, %54 : vector<8x128xf32>
    %133 = arith.addf %127, %132 : vector<8x128xf32>
    %134 = vector.broadcast %21 : f32 to vector<8x128xf32>
    %135 = arith.mulf %134, %57 : vector<8x128xf32>
    %136 = arith.addf %130, %135 : vector<8x128xf32>
    %137 = vector.broadcast %27 : f32 to vector<8x128xf32>
    %138 = arith.mulf %137, %57 : vector<8x128xf32>
    %139 = arith.addf %133, %138 : vector<8x128xf32>
    %140 = vector.broadcast %22 : f32 to vector<8x128xf32>
    %141 = arith.mulf %140, %84 : vector<8x128xf32>
    %142 = arith.addf %136, %141 : vector<8x128xf32>
    %143 = vector.broadcast %28 : f32 to vector<8x128xf32>
    %144 = arith.mulf %143, %84 : vector<8x128xf32>
    %145 = arith.addf %139, %144 : vector<8x128xf32>
    %146 = vector.broadcast %23 : f32 to vector<8x128xf32>
    %147 = arith.mulf %146, %117 : vector<8x128xf32>
    %148 = arith.addf %142, %147 : vector<8x128xf32>
    %149 = vector.broadcast %29 : f32 to vector<8x128xf32>
    %150 = arith.mulf %149, %117 : vector<8x128xf32>
    %151 = arith.addf %145, %150 : vector<8x128xf32>
    %152 = vector.broadcast %34 : f32 to vector<8x128xf32>
    %153 = arith.addf %148, %152 : vector<8x128xf32>
    %154 = vector.broadcast %35 : f32 to vector<8x128xf32>
    %155 = arith.addf %151, %154 : vector<8x128xf32>
    %156 = arith.mulf %153, %155 : vector<8x128xf32>
    %157 = vector.broadcast %36 : f32 to vector<8x128xf32>
    %158 = arith.mulf %157, %48 : vector<8x128xf32>
    %159 = vector.broadcast %37 : f32 to vector<8x128xf32>
    %160 = arith.mulf %159, %51 : vector<8x128xf32>
    %161 = arith.addf %158, %160 : vector<8x128xf32>
    %162 = vector.broadcast %38 : f32 to vector<8x128xf32>
    %163 = arith.mulf %162, %54 : vector<8x128xf32>
    %164 = arith.addf %161, %163 : vector<8x128xf32>
    %165 = vector.broadcast %39 : f32 to vector<8x128xf32>
    %166 = arith.mulf %165, %57 : vector<8x128xf32>
    %167 = arith.addf %164, %166 : vector<8x128xf32>
    %168 = vector.broadcast %40 : f32 to vector<8x128xf32>
    %169 = arith.mulf %168, %84 : vector<8x128xf32>
    %170 = arith.addf %167, %169 : vector<8x128xf32>
    %171 = vector.broadcast %41 : f32 to vector<8x128xf32>
    %172 = arith.mulf %171, %117 : vector<8x128xf32>
    %173 = arith.addf %170, %172 : vector<8x128xf32>
    %174 = vector.broadcast %42 : f32 to vector<8x128xf32>
    %175 = arith.mulf %174, %156 : vector<8x128xf32>
    %176 = arith.addf %173, %175 : vector<8x128xf32>
    %177 = vector.broadcast %43 : f32 to vector<8x128xf32>
    %178 = arith.addf %176, %177 : vector<8x128xf32>
    %179 = arith.index_cast %45 : i32 to index
    %c0_19 = arith.constant 0 : index
    %180 = vector.load %arg6[%179, %c0_19] : memref<8x128xf32, #tpu.memory_space<vmem>>, vector<8x128xf32>
    tpu.vector_store %arg6[%179, %c0_19], %178 {strides = array<i32>} : memref<8x128xf32, #tpu.memory_space<vmem>>, vector<8x128xf32>,
    %c1_i32 = arith.constant 1 : i32
    return
  }
  func.func @transform_0(%arg0: i32) -> i32 {
    %c0_i32 = arith.constant 0 : i32
    %c0_i32_0 = arith.constant 0 : i32
    return %c0_i32 : i32
  }
  func.func @transform_1(%arg0: i32) -> i32 {
    %c0_i32 = arith.constant 0 : i32
    %c0_i32_0 = arith.constant 0 : i32
    return %c0_i32 : i32
  }
  func.func @transform_2(%arg0: i32) -> i32 {
    %c0_i32 = arith.constant 0 : i32
    %c0_i32_0 = arith.constant 0 : i32
    return %c0_i32 : i32
  }
  func.func @transform_3(%arg0: i32) -> i32 {
    %c0_i32 = arith.constant 0 : i32
    %c0_i32_0 = arith.constant 0 : i32
    return %c0_i32 : i32
  }
  func.func @transform_4(%arg0: i32) -> (i32, i32, i32) {
    %c0_i32 = arith.constant 0 : i32
    %c0_i32_0 = arith.constant 0 : i32
    %c0_i32_1 = arith.constant 0 : i32
    return %c0_i32, %arg0, %c0_i32_0 : i32, i32, i32
  }
  func.func @transform_5(%arg0: i32) -> (i32, i32) {
    %c0_i32 = arith.constant 0 : i32
    %c0_i32_0 = arith.constant 0 : i32
    return %arg0, %c0_i32 : i32, i32
  }
}

</mosaic_0001>

<llo_original>
// kernel: symnet_forward.1
$region0: #{symnet_forward.1}
  #allocation0 [shape = 'u32[]', space=smem, size = 0x4, offset = 0x4, fixed_abs, tag = 'smem constant byte address 0x4 - core index']
  #allocation1 [shape = 'u32[144,128]{1,0:T(1,128)}', space=vmem, size = 0x12000, scoped, tag = 'internal scratch']
  #allocation2 [shape = 'f32[1]{0:T(128)S(6)}', space=smem, size = 0x200, scoped, tag = 'scoped memory for symnet_forward.1']
  %s0 = inlined_call_operand.vmem [shape: f32[42], index: 0, kind: input, shape index: {}]
  %s1 = inlined_call_operand.vmem [shape: f32[6], index: 1, kind: input, shape index: {}]
  %s2 = inlined_call_operand.vmem [shape: f32[7], index: 2, kind: input, shape index: {}]
  %s3 = inlined_call_operand.<no memory space> [shape: f32[1], index: 3, kind: input, shape index: {}]
  %s4 = inlined_call_operand.vmem [shape: f32[4,8,128], index: 4, kind: input, shape index: {}]
  %s5 = inlined_call_operand.vmem [shape: f32[8,128], index: 5, kind: output, shape index: {}]
  %s6 = sld [smem:[#allocation0]]
  $region42: #{symnet_forward.1} parent=0
    _
  %s8 = ssub.s32 1, %s6
  %s9 = scalar_select 0, %s8, %s6
  %10 = sst [smem:[#allocation2]] %s3
  $region1: #{symnet_forward.1} parent=0
    #allocation3 [shape = 'u8[512]{0}', space=smem, size = 0x200, scoped, tag = 'input window, operand 0, single buffered']
    #allocation4 [shape = 's32[1]{0}', space=sflag, size = 0x4, scoped, tag = 'scoped memory for symnet_forward.1']
    #allocation5 [shape = 'u8[512]{0}', space=smem, size = 0x200, scoped, tag = 'input window, operand 1, single buffered']
    #allocation6 [shape = 's32[1]{0}', space=sflag, size = 0x4, scoped, tag = 'scoped memory for symnet_forward.1']
    #allocation7 [shape = 'u8[512]{0}', space=smem, size = 0x200, scoped, tag = 'input window, operand 2, single buffered']
    %11 = vsyncpa [#allocation4], 0
    %12 = vsyncpa [#allocation6], 0
    // Predicated region
    $region2: #{symnet_forward.1} parent=1 // pred_check
      _
    $region3: #{symnet_forward.1} parent=1 // pred_check_branch
      %14 = sbr.rel (0) target = $region5
    $region4: #{symnet_forward.1} parent=1 // pred_region
      %s16 = ssub.s32 16, 16
      %17 = vsyncadd [#allocation4], %s16
      %s19 = sshll.u32 %s0, 4
      %s20 = int_to_ptr.vmem [resolvable:$true] %s19
      %22 = dma.vmem_to_smem %s20, 16, [#allocation3], [#allocation4]
    $region5: #{symnet_forward.1} parent=1 // pred_fallthru
      _
    // Predicated region
    $region6: #{symnet_forward.1} parent=1 // pred_check
      _
    $region7: #{symnet_forward.1} parent=1 // pred_check_branch
      %24 = sbr.rel (0) target = $region9
    $region8: #{symnet_forward.1} parent=1 // pred_region
      %s26 = ssub.s32 16, 16
      %27 = vsyncadd [#allocation6], %s26
      %s29 = sshll.u32 %s1, 4
      %s30 = int_to_ptr.vmem [resolvable:$true] %s29
      %32 = dma.vmem_to_smem %s30, 16, [#allocation5], [#allocation6]
    $region9: #{symnet_forward.1} parent=1 // pred_fallthru
      _
    // Predicated region
    $region10: #{symnet_forward.1} parent=1 // pred_check
      _
    $region11: #{symnet_forward.1} parent=1 // pred_check_branch
      %34 = sbr.rel (0) target = $region13
    $region12: #{symnet_forward.1} parent=1 // pred_region
      %s36 = ssub.s32 16, 16
      %37 = vsyncadd [#allocation6], %s36
      %s39 = sshll.u32 %s2, 4
      %s40 = int_to_ptr.vmem [resolvable:$true] %s39
      %42 = dma.vmem_to_smem %s40, 16, [#allocation7], [#allocation6]
    $region13: #{symnet_forward.1} parent=1 // pred_fallthru
      _
    // Predicated region
    $region14: #{symnet_forward.1} parent=1 // pred_check
      _
    $region15: #{symnet_forward.1} parent=1 // pred_check_branch
      %44 = sbr.rel (0) target = $region17
    $region16: #{symnet_forward.1} parent=1 // pred_region
      _
    $region17: #{symnet_forward.1} parent=1 // pred_fallthru
      _
    // Predicated region
    $region18: #{symnet_forward.1} parent=1 // pred_check
      _
    $region19: #{symnet_forward.1} parent=1 // pred_check_branch
      %46 = sbr.rel (0) target = $region21
    $region20: #{symnet_forward.1} parent=1 // pred_region
      _
    $region21: #{symnet_forward.1} parent=1 // pred_fallthru
      _
    // Predicated region
    $region22: #{symnet_forward.1} parent=1 // pred_check
      _
    $region23: #{symnet_forward.1} parent=1 // pred_check_branch
      %48 = sbr.rel (0) target = $region25
    $region24: #{symnet_forward.1} parent=1 // pred_region
      %49 = dma.done [#allocation4], 16
    $region25: #{symnet_forward.1} parent=1 // pred_fallthru
      _
    // Predicated region
    $region26: #{symnet_forward.1} parent=1 // pred_check
      _
    $region27: #{symnet_forward.1} parent=1 // pred_check_branch
      %51 = sbr.rel (0) target = $region29
    $region28: #{symnet_forward.1} parent=1 // pred_region
      %52 = dma.done [#allocation6], 16
    $region29: #{symnet_forward.1} parent=1 // pred_fallthru
      _
    // Predicated region
    $region30: #{symnet_forward.1} parent=1 // pred_check
      _
    $region31: #{symnet_forward.1} parent=1 // pred_check_branch
      %54 = sbr.rel (0) target = $region33
    $region32: #{symnet_forward.1} parent=1 // pred_region
      %55 = dma.done [#allocation6], 16
    $region33: #{symnet_forward.1} parent=1 // pred_fallthru
      _
    %56 = sfence
    %s57 = sld [smem:[#allocation3]]
    %s58 = sld [smem:[#allocation3 + $0x1]]
    %s59 = sld [smem:[#allocation3 + $0x2]]
    %s60 = sld [smem:[#allocation3 + $0x3]]
    %s61 = sld [smem:[#allocation3 + $0x7]]
    %s62 = sld [smem:[#allocation3 + $0x8]]
    %s63 = sld [smem:[#allocation3 + $0x9]]
    %s64 = sld [smem:[#allocation3 + $0xa]]
    %s65 = sld [smem:[#allocation3 + $0xe]]
    %s66 = sld [smem:[#allocation3 + $0xf]]
    %s67 = sld [smem:[#allocation3 + $0x10]]
    %s68 = sld [smem:[#allocation3 + $0x11]]
    %s69 = sld [smem:[#allocation3 + $0x12]]
    %s70 = sld [smem:[#allocation3 + $0x15]]
    %s71 = sld [smem:[#allocation3 + $0x16]]
    %s72 = sld [smem:[#allocation3 + $0x17]]
    %s73 = sld [smem:[#allocation3 + $0x18]]
    %s74 = sld [smem:[#allocation3 + $0x19]]
    %s75 = sld [smem:[#allocation3 + $0x1c]]
    %s76 = sld [smem:[#allocation3 + $0x1d]]
    %s77 = sld [smem:[#allocation3 + $0x1e]]
    %s78 = sld [smem:[#allocation3 + $0x1f]]
    %s79 = sld [smem:[#allocation3 + $0x20]]
    %s80 = sld [smem:[#allocation3 + $0x21]]
    %s81 = sld [smem:[#allocation3 + $0x23]]
    %s82 = sld [smem:[#allocation3 + $0x24]]
    %s83 = sld [smem:[#allocation3 + $0x25]]
    %s84 = sld [smem:[#allocation3 + $0x26]]
    %s85 = sld [smem:[#allocation3 + $0x27]]
    %s86 = sld [smem:[#allocation3 + $0x28]]
    %s87 = sld [smem:[#allocation5]]
    %s88 = sld [smem:[#allocation5 + $0x1]]
    %s89 = sld [smem:[#allocation5 + $0x2]]
    %s90 = sld [smem:[#allocation5 + $0x3]]
    %s91 = sld [smem:[#allocation5 + $0x4]]
    %s92 = sld [smem:[#allocation5 + $0x5]]
    %s93 = sld [smem:[#allocation7]]
    %s94 = sld [smem:[#allocation7 + $0x1]]
    %s95 = sld [smem:[#allocation7 + $0x2]]
    %s96 = sld [smem:[#allocation7 + $0x3]]
    %s97 = sld [smem:[#allocation7 + $0x4]]
    %s98 = sld [smem:[#allocation7 + $0x5]]
    %s99 = sld [smem:[#allocation7 + $0x6]]
    %s100 = sld [smem:[#allocation2]]
    %v101 = vld [vmem:[%s4] sm:$0xff]
    %s102 = sadd.s32 0, 8
    %s103 = scalar_lea.vmem %s4, %s102
    %v104 = vld [vmem:[%s103] sm:$0xff]
    %s105 = sadd.s32 0, 16
    %s106 = scalar_lea.vmem %s4, %s105
    %v107 = vld [vmem:[%s106] sm:$0xff]
    %s108 = sadd.s32 0, 24
    %s109 = scalar_lea.vmem %s4, %s108
    %v110 = vld [vmem:[%s109] sm:$0xff]
    %v111 = vstv %s57
    %v112 = vmul.f32 %v111, %v101
    %v113 = vstv %s61
    %v114 = vmul.f32 %v113, %v101
    %v115 = vstv %s58
    %v116 = vmul.f32 %v115, %v104
    %v117 = vadd.f32 %v112, %v116
    %v118 = vstv %s62
    %v119 = vmul.f32 %v118, %v104
    %v120 = vadd.f32 %v114, %v119
    %v121 = vstv %s59
    %v122 = vmul.f32 %v121, %v107
    %v123 = vadd.f32 %v117, %v122
    %v124 = vstv %s63
    %v125 = vmul.f32 %v124, %v107
    %v126 = vadd.f32 %v120, %v125
    %v127 = vstv %s60
    %v128 = vmul.f32 %v127, %v110
    %v129 = vadd.f32 %v123, %v128
    %v130 = vstv %s64
    %v131 = vmul.f32 %v130, %v110
    %v132 = vadd.f32 %v126, %v131
    %v133 = vstv %s87
    %v134 = vadd.f32 %v129, %v133
    %v135 = vstv %s88
    %v136 = vadd.f32 %v132, %v135
    %v137 = vmul.f32 %v134, %v136
    %v138 = vstv %s65
    %v139 = vmul.f32 %v138, %v101
    %v140 = vstv %s70
    %v141 = vmul.f32 %v140, %v101
    %v142 = vstv %s66
    %v143 = vmul.f32 %v142, %v104
    %v144 = vadd.f32 %v139, %v143
    %v145 = vstv %s71
    %v146 = vmul.f32 %v145, %v104
    %v147 = vadd.f32 %v141, %v146
    %v148 = vstv %s67
    %v149 = vmul.f32 %v148, %v107
    %v150 = vadd.f32 %v144, %v149
    %v151 = vstv %s72
    %v152 = vmul.f32 %v151, %v107
    %v153 = vadd.f32 %v147, %v152
    %v154 = vstv %s68
    %v155 = vmul.f32 %v154, %v110
    %v156 = vadd.f32 %v150, %v155
    %v157 = vstv %s73
    %v158 = vmul.f32 %v157, %v110
    %v159 = vadd.f32 %v153, %v158
    %v160 = vstv %s69
    %v161 = vmul.f32 %v160, %v137
    %v162 = vadd.f32 %v156, %v161
    %v163 = vstv %s74
    %v164 = vmul.f32 %v163, %v137
    %v165 = vadd.f32 %v159, %v164
    %v166 = vstv %s89
    %v167 = vadd.f32 %v162, %v166
    %v168 = vstv %s90
    %v169 = vadd.f32 %v165, %v168
    %v170 = vmul.f32 %v167, %v169
    %v171 = vstv %s75
    %v172 = vmul.f32 %v171, %v101
    %v173 = vstv %s81
    %v174 = vmul.f32 %v173, %v101
    %v175 = vstv %s76
    %v176 = vmul.f32 %v175, %v104
    %v177 = vadd.f32 %v172, %v176
    %v178 = vstv %s82
    %v179 = vmul.f32 %v178, %v104
    %v180 = vadd.f32 %v174, %v179
    %v181 = vstv %s77
    %v182 = vmul.f32 %v181, %v107
    %v183 = vadd.f32 %v177, %v182
    %v184 = vstv %s83
    %v185 = vmul.f32 %v184, %v107
    %v186 = vadd.f32 %v180, %v185
    %v187 = vstv %s78
    %v188 = vmul.f32 %v187, %v110
    %v189 = vadd.f32 %v183, %v188
    %v190 = vstv %s84
    %v191 = vmul.f32 %v190, %v110
    %v192 = vadd.f32 %v186, %v191
    %v193 = vstv %s79
    %v194 = vmul.f32 %v193, %v137
    %v195 = vadd.f32 %v189, %v194
    %v196 = vstv %s85
    %v197 = vmul.f32 %v196, %v137
    %v198 = vadd.f32 %v192, %v197
    %v199 = vstv %s80
    %v200 = vmul.f32 %v199, %v170
    %v201 = vadd.f32 %v195, %v200
    %v202 = vstv %s86
    %v203 = vmul.f32 %v202, %v170
    %v204 = vadd.f32 %v198, %v203
    %v205 = vstv %s91
    %v206 = vadd.f32 %v201, %v205
    %v207 = vstv %s92
    %v208 = vadd.f32 %v204, %v207
    %v209 = vmul.f32 %v206, %v208
    %v210 = vstv %s93
    %v211 = vmul.f32 %v210, %v101
    %v212 = vstv %s94
    %v213 = vmul.f32 %v212, %v104
    %v214 = vadd.f32 %v211, %v213
    %v215 = vstv %s95
    %v216 = vmul.f32 %v215, %v107
    %v217 = vadd.f32 %v214, %v216
    %v218 = vstv %s96
    %v219 = vmul.f32 %v218, %v110
    %v220 = vadd.f32 %v217, %v219
    %v221 = vstv %s97
    %v222 = vmul.f32 %v221, %v137
    %v223 = vadd.f32 %v220, %v222
    %v224 = vstv %s98
    %v225 = vmul.f32 %v224, %v170
    %v226 = vadd.f32 %v223, %v225
    %v227 = vstv %s99
    %v228 = vmul.f32 %v227, %v209
    %v229 = vadd.f32 %v226, %v228
    %v230 = vstv %s100
    %v231 = vadd.f32 %v229, %v230
    %232 = vst [vmem:[%s5] sm:$0xff] %v231
    // Predicated region
    $region34: #{symnet_forward.1} parent=1 // pred_check
      _
    $region35: #{symnet_forward.1} parent=1 // pred_check_branch
      %234 = sbr.rel (0) target = $region37
    $region36: #{symnet_forward.1} parent=1 // pred_region
      _
    $region37: #{symnet_forward.1} parent=1 // pred_fallthru
      _
    // Predicated region
    $region38: #{symnet_forward.1} parent=1 // pred_check
      _
    $region39: #{symnet_forward.1} parent=1 // pred_check_branch
      %236 = sbr.rel (0) target = $region41
    $region40: #{symnet_forward.1} parent=1 // pred_region
      _
    $region41: #{symnet_forward.1} parent=1 // pred_fallthru
      _
    %237 = vsyncpa [#allocation4], 1
    %238 = vsyncpa [#allocation6], 1

</llo_original>
